<compile_context>
chip_gen: v6e
topology: v6e:2x2x1
jax: 0.10.0
libtpu: 0.0.40
codegen_flags: <defaults>
</compile_context>

<pallas_src>
import jax
import jax.numpy as jnp
from jax.experimental import pallas as pl
from jax.experimental.pallas import tpu as pltpu

_LANE = 128
_SUBLANE_ALIGN = 16                      # keeps bf16 packed tiles aligned too
_TARGET_BLOCK_BYTES = 6 * 1024 * 1024    # ~6 MiB per block (per perf review)
_VMEM_LIMIT_BYTES = 40 * 1024 * 1024     # in+out x double-buffer ~24 MiB < 40 MiB


def _h_sigmoid_kernel(x_ref, o_ref):
    # relu6(x + 3) / 6  ==  clamp(x + 3, 0, 6) * (1/6), computed in f32.
    x = x_ref[...].astype(jnp.float32)
    o_ref[...] = (jnp.clip(x + 3.0, 0.0, 6.0) * (1.0 / 6.0)).astype(o_ref.dtype)


def _xla_h_sigmoid(x):
    return (jnp.clip(x.astype(jnp.float32) + 3.0, 0.0, 6.0) / 6.0).astype(x.dtype)


def _balanced_block_rows(rows: int, block_rows: int) -> int:
    """Sublane-aligned row block; keep the 1-D grid >= 8 (ideally even) steps."""
    if rows <= _SUBLANE_ALIGN:
        return rows                                        # single full-dim block
    tr = max(_SUBLANE_ALIGN,
             (min(block_rows, rows) // _SUBLANE_ALIGN) * _SUBLANE_ALIGN)
    max_steps = -(-rows // _SUBLANE_ALIGN)
    target_steps = min(8, max_steps)
    if -(-rows // tr) < target_steps:
        tr = max(_SUBLANE_ALIGN,
                 ((-(-rows // target_steps)) // _SUBLANE_ALIGN) * _SUBLANE_ALIGN)
    steps = -(-rows // tr)
    # Prefer an even step count so ("parallel",) sharding balances v7x's 2 TCs.
    if steps % 2 and steps < max_steps:
        tr_even = max(_SUBLANE_ALIGN,
                      ((-(-rows // (steps + 1))) // _SUBLANE_ALIGN) * _SUBLANE_ALIGN)
        if (-(-rows // tr_even)) % 2 == 0:
            tr = tr_even
    return tr


def h_sigmoid(x: jax.Array, *, block_rows: int | None = None,
              small_fallback_bytes: int = 256 * 1024) -> jax.Array:
    """Elementwise h_sigmoid over an arbitrary-shaped array (NCHW in tests)."""
    orig_shape = x.shape
    orig_dtype = x.dtype
    total = x.size
    itemsize = jnp.dtype(orig_dtype).itemsize

    # Tiny tensors, or totals not divisible by 128: plain XLA (near roofline
    # for elementwise ops, and avoids any pad/slice copies).
    if total * itemsize < small_fallback_bytes or total % _LANE != 0:
        return _xla_h_sigmoid(x)

    rows = total // _LANE
    x2d = x.reshape(rows, _LANE)          # metadata-only reshape, no copy

    if block_rows is None:
        # Auto-size (~6 MiB/block) and balance the grid for 2-TC chips.
        auto_rows = max(_SUBLANE_ALIGN, _TARGET_BLOCK_BYTES // (_LANE * itemsize))
        tr = _balanced_block_rows(rows, auto_rows)
    else:
        # Explicit override: just clamp and sublane-align.
        tr = min(block_rows, rows)
        if rows > _SUBLANE_ALIGN:
            tr = max(_SUBLANE_ALIGN, (tr // _SUBLANE_ALIGN) * _SUBLANE_ALIGN)

    grid = (pl.cdiv(rows, tr),)           # partial last block is masked by Pallas

    out2d = pl.pallas_call(
        _h_sigmoid_kernel,
        out_shape=jax.ShapeDtypeStruct((rows, _LANE), orig_dtype),
        grid_spec=pl.GridSpec(
            grid=grid,
            in_specs=[pl.BlockSpec((tr, _LANE), lambda i: (i, 0))],
            out_specs=pl.BlockSpec((tr, _LANE), lambda i: (i, 0)),
        ),
        compiler_params=pltpu.CompilerParams(
            dimension_semantics=("parallel",),
            vmem_limit_bytes=_VMEM_LIMIT_BYTES,
        ),
        cost_estimate=pl.CostEstimate(
            flops=3 * total,
            transcendentals=0,
            bytes_accessed=2 * total * itemsize,
        ),
    )(x2d)

    return out2d.reshape(orig_shape)


def _ref(x):
    return jnp.clip(x.astype(jnp.float32) + 3.0, 0.0, 6.0) / 6.0


if __name__ == "__main__":
    k0, k1, k2, k3, k4 = jax.random.split(jax.random.PRNGKey(0), 5)

    # 1) Small NCHW input (same convention as the PyTorch module); force the
    #    Pallas path so the kernel itself is exercised (single-block grid).
    x = jax.random.normal(k0, (2, 4, 16, 16), dtype=jnp.float32) * 4.0
    y = jax.block_until_ready(h_sigmoid(x, small_fallback_bytes=0))
    assert y.shape == x.shape and y.dtype == x.dtype
    assert jnp.max(jnp.abs(y - _ref(x))) < 1e-6

    # 2) Default path (small-input XLA fallback) must match too.
    y_fb = jax.block_until_ready(h_sigmoid(x))
    assert jnp.max(jnp.abs(y_fb - _ref(x))) < 1e-6

    # 3) Multi-block grid with a partial last tile (200 rows, 64-row blocks).
    x2 = jax.random.normal(k1, (2, 8, 40, 40), dtype=jnp.float32) * 4.0
    y2 = jax.block_until_ready(
        h_sigmoid(x2, block_rows=64, small_fallback_bytes=0))
    assert y2.shape == x2.shape and y2.dtype == x2.dtype
    assert jnp.max(jnp.abs(y2 - _ref(x2))) < 1e-6

    # 4) Auto block sizing + grid-balance heuristic path.
    x3 = jax.random.normal(k2, (2, 32, 64, 64), dtype=jnp.float32) * 4.0
    y3 = jax.block_until_ready(h_sigmoid(x3, small_fallback_bytes=0))
    assert y3.shape == x3.shape and y3.dtype == x3.dtype
    assert jnp.max(jnp.abs(y3 - _ref(x3))) < 1e-6

    # 5) bf16 input: kernel computes in f32 and casts once at the store.
    x4 = (jax.random.normal(k3, (2, 4, 32, 32), dtype=jnp.float32) * 4.0
          ).astype(jnp.bfloat16)
    y4 = jax.block_until_ready(h_sigmoid(x4, small_fallback_bytes=0))
    assert y4.shape == x4.shape and y4.dtype == jnp.bfloat16
    assert jnp.max(jnp.abs(y4.astype(jnp.float32) - _ref(x4))) < 2e-2

    # 6) Total not a multiple of 128: clean XLA fallback (no pad/slice copies).
    x5 = jax.random.normal(k4, (2, 3, 5, 7), dtype=jnp.float32) * 4.0
    y5 = jax.block_until_ready(h_sigmoid(x5, small_fallback_bytes=0))
    assert y5.shape == x5.shape and y5.dtype == x5.dtype
    assert jnp.max(jnp.abs(y5 - _ref(x5))) < 1e-6

    print("KERNEL_OK")
</pallas_src>

<mosaic_0001>
module attributes {stable_mosaic.version = 11 : i64} {
  func.func @_h_sigmoid_kernel(%arg0: i32, %arg1: memref<16x128xf32, #tpu.memory_space<vmem>>, %arg2: memref<16x128xf32, #tpu.memory_space<vmem>>) attributes {dimension_semantics = [#tpu.dimension_semantics<parallel>], iteration_bounds = array<i64: 1>, scalar_prefetch = 0 : i64, scratch_operands = 0 : i64, tpu.core_type = #tpu.core_type<tc>, window_params = [{transform_indices = @transform_0, window_bounds = array<i64: 16, 128>}, {transform_indices = @transform_1, window_bounds = array<i64: 16, 128>}]} {
    %c0 = arith.constant 0 : index
    %c0_0 = arith.constant 0 : index
    %0 = vector.load %arg1[%c0, %c0_0] : memref<16x128xf32, #tpu.memory_space<vmem>>, vector<16x128xf32>
    %cst = arith.constant 3.000000e+00 : f32
    %1 = vector.broadcast %cst : f32 to vector<16x128xf32>
    %2 = arith.addf %0, %1 : vector<16x128xf32>
    %cst_1 = arith.constant 0.000000e+00 : f32
    %cst_2 = arith.constant 6.000000e+00 : f32
    %3 = vector.broadcast %cst_1 : f32 to vector<16x128xf32>
    %4 = arith.maximumf %3, %2 : vector<16x128xf32>
    %5 = vector.broadcast %cst_2 : f32 to vector<16x128xf32>
    %6 = arith.minimumf %5, %4 : vector<16x128xf32>
    %cst_3 = arith.constant 0.166666672 : f32
    %7 = vector.broadcast %cst_3 : f32 to vector<16x128xf32>
    %8 = arith.mulf %6, %7 : vector<16x128xf32>
    %c0_4 = arith.constant 0 : index
    %c0_5 = arith.constant 0 : index
    %9 = vector.load %arg2[%c0_4, %c0_5] : memref<16x128xf32, #tpu.memory_space<vmem>>, vector<16x128xf32>
    tpu.vector_store %arg2[%c0_4, %c0_5], %8 {strides = array<i32>} : memref<16x128xf32, #tpu.memory_space<vmem>>, vector<16x128xf32>,
    return
  }
  func.func @transform_0(%arg0: i32) -> (i32, i32) {
    %c0_i32 = arith.constant 0 : i32
    %c0_i32_0 = arith.constant 0 : i32
    return %arg0, %c0_i32 : i32, i32
  }
  func.func @transform_1(%arg0: i32) -> (i32, i32) {
    %c0_i32 = arith.constant 0 : i32
    %c0_i32_0 = arith.constant 0 : i32
    return %arg0, %c0_i32 : i32, i32
  }
}

</mosaic_0001>

<llo_original>
// kernel: tpu_custom_call.1
$region0: #{tpu_custom_call.1}
  #allocation0 [shape = 'u32[]', space=smem, size = 0x4, offset = 0x4, fixed_abs, tag = 'smem constant byte address 0x4 - core index']
  #allocation1 [shape = 'u32[144,128]{1,0:T(1,128)}', space=vmem, size = 0x12000, scoped, tag = 'internal scratch']
  %s0 = inlined_call_operand.hbm [shape: f32[16,128], index: 0, kind: input, shape index: {}]
  %s1 = inlined_call_operand.hbm [shape: f32[16,128], index: 1, kind: output, shape index: {}]
  %s2 = sld [smem:[#allocation0]]
  $region18: #{tpu_custom_call.1} parent=0
    _
  %s4 = ssub.s32 1, %s2
  %s5 = scalar_select 0, %s4, %s2
  $region1: #{tpu_custom_call.1} parent=0
    #allocation2 [shape = 'u8[8192]{0}', space=vmem, size = 0x2000, scoped, tag = 'input window, operand 0, single buffered']
    #allocation3 [shape = 's32[1]{0}', space=sflag, size = 0x4, scoped, tag = 'scoped memory for tpu_custom_call.1']
    #allocation4 [shape = 's32[1]{0}', space=sflag, size = 0x4, scoped, tag = 'scoped memory for tpu_custom_call.1']
    #allocation5 [shape = 'u8[8192]{0}', space=vmem, size = 0x2000, scoped, tag = 'output window, operand 0, single buffered']
    %6 = vsyncpa [#allocation3], 0
    %7 = vsyncpa [#allocation4], 0
    // Predicated region
    $region2: #{tpu_custom_call.1} parent=1 // pred_check
      _
    $region3: #{tpu_custom_call.1} parent=1 // pred_check_branch
      %9 = sbr.rel (0) target = $region5
    $region4: #{tpu_custom_call.1} parent=1 // pred_region
      %s11 = ssub.s32 256, 256
      %12 = vsyncadd [#allocation3], %s11
      %s13 = sshll.u32 [#allocation2], 4
      %s14 = int_to_ptr.vmem [resolvable:$true] %s13
      %19 = dma.hbm_to_vmem [thread:$0]  %s0, 256, %s14, [#allocation3], 128, 128, 8
    $region5: #{tpu_custom_call.1} parent=1 // pred_fallthru
      _
    // Predicated region
    $region6: #{tpu_custom_call.1} parent=1 // pred_check
      _
    $region7: #{tpu_custom_call.1} parent=1 // pred_check_branch
      %21 = sbr.rel (0) target = $region9
    $region8: #{tpu_custom_call.1} parent=1 // pred_region
      %22 = dma.done [#allocation3], 256
    $region9: #{tpu_custom_call.1} parent=1 // pred_fallthru
      _
    %v23 = vld [vmem:[#allocation2] sm:$0xff]
    %v24 = vld [vmem:[#allocation2 + $0x8] sm:$0xff]
    %v25 = vadd.f32 %v23, 3.0
    %v26 = vadd.f32 %v24, 3.0
    %v27 = vmax.f32 %v25, 0.0
    %v28 = vmax.f32 %v26, 0.0
    %v29 = vmin.f32 %v27, 6.0
    %v30 = vmin.f32 %v28, 6.0
    %v31 = vmul.f32 %v29, 0.16666667
    %v32 = vmul.f32 %v30, 0.16666667
    %33 = vst [vmem:[#allocation5] sm:$0xff] %v31
    %34 = vst [vmem:[#allocation5 + $0x8] sm:$0xff] %v32
    // Predicated region
    $region10: #{tpu_custom_call.1} parent=1 // pred_check
      _
    $region11: #{tpu_custom_call.1} parent=1 // pred_check_branch
      %36 = sbr.rel (0) target = $region13
    $region12: #{tpu_custom_call.1} parent=1 // pred_region
      %s38 = ssub.s32 256, 256
      %39 = vsyncadd [#allocation4], %s38
      %s40 = sshll.u32 [#allocation5], 4
      %s41 = int_to_ptr.vmem [resolvable:$true] %s40
      %46 = dma.vmem_to_hbm [thread:$0]  %s41, 256, %s1, [#allocation4], 128, 128, 8
    $region13: #{tpu_custom_call.1} parent=1 // pred_fallthru
      _
    // Predicated region
    $region14: #{tpu_custom_call.1} parent=1 // pred_check
      _
    $region15: #{tpu_custom_call.1} parent=1 // pred_check_branch
      %48 = sbr.rel (0) target = $region17
    $region16: #{tpu_custom_call.1} parent=1 // pred_region
      %49 = dma.done [#allocation4], 256
    $region17: #{tpu_custom_call.1} parent=1 // pred_fallthru
      _
    %50 = vsyncpa [#allocation3], 1
    %51 = vsyncpa [#allocation4], 1

</llo_original>
